<compile_context>
chip_gen: v6e
topology: v6e:2x2x1
jax: 0.10.0
libtpu: 0.0.40
codegen_flags: <defaults>
</compile_context>

<pallas_src>
import jax
import jax.numpy as jnp
from jax import lax
from jax.experimental import pallas as pl
from jax.experimental.pallas import tpu as pltpu


# ---- packed-weight row layouts (all section offsets 8-aligned) ----
# compact slab, width 16 lanes:
W_SMALL_ROWS = 104
_W1R = 0      # rows  0:16   W1_rel^T   (16, 16)
_W1O = 16     # rows 16:32   W1_root^T  (16, 16)
_B1 = 32      # rows 32:40   b1 replicated x8      (8, 16)
_W2R = 40     # rows 40:56   W2_rel^T   (16, 16)
_W2O = 56     # rows 56:72   W2_root^T  (16, 16)
_B2 = 72      # rows 72:80   b2 replicated x8      (8, 16)
_WF1 = 80     # rows 80:96   Wf1^T      (16, 8) in cols 0:8
_BF1 = 96     # rows 96:104  bf1 replicated x8     (8, 8) in cols 0:8
# fc2 slab, width 128 lanes (lane-dense output path):
W_FC2_ROWS = 16
_WF2 = 0      # rows 0:8     Wf2^T zero-padded     (8, 128), only cols 0:2 nonzero
_BF2 = 8      # rows 8:16    bf2 replicated x8     (8, 128), only cols 0:2 nonzero


def gnn_kernel(x_ref, ei_ref, ws_ref, wf2_ref, out_ref):
    n = x_ref.shape[0]          # static (<= 8 so the replicated-bias views line up)
    e = ei_ref.shape[1]

    x = x_ref[...]              # (N, 16) f32
    ei = ei_ref[...]            # (2, E)  int32: row 0 = src, row 1 = dst

    # ---- build dense adjacency from the edge list, on the MXU ----
    # onehot_src[j, e] = (src[e] == j), onehot_dst[i, e] = (dst[e] == i)
    # adj[i, j] = sum_e onehot_dst[i, e] * onehot_src[j, e] = #edges j -> i
    node_vs_edge = lax.broadcasted_iota(jnp.int32, (n, e), 0)      # (N, E)
    src = ei[0:1, :]                                               # (1, E)
    dst = ei[1:2, :]                                               # (1, E)
    onehot_src = jnp.where(node_vs_edge == src, 1.0, 0.0).astype(jnp.float32)
    onehot_dst = jnp.where(node_vs_edge == dst, 1.0, 0.0).astype(jnp.float32)
    adj = lax.dot_general(onehot_dst, onehot_src,
                          (((1,), (1,)), ((), ())),
                          preferred_element_type=jnp.float32)      # (N, N)

    # ---- static views of the packed weights (zero-cost slicing) ----
    w1r = ws_ref[_W1R:_W1R + 16, :]          # (16, 16)  W1_rel^T
    w1o = ws_ref[_W1O:_W1O + 16, :]          # (16, 16)  W1_root^T
    b1 = ws_ref[_B1:_B1 + n, :]              # (N, 16)   pre-replicated bias
    w2r = ws_ref[_W2R:_W2R + 16, :]          # (16, 16)
    w2o = ws_ref[_W2O:_W2O + 16, :]          # (16, 16)
    b2 = ws_ref[_B2:_B2 + n, :]              # (N, 16)
    wf1 = ws_ref[_WF1:_WF1 + 16, 0:8]        # (16, 8)
    bf1 = ws_ref[_BF1:_BF1 + n, 0:8]         # (N, 8)
    wf2 = wf2_ref[_WF2:_WF2 + 8, :]          # (8, 128), only cols 0:2 nonzero
    bf2 = wf2_ref[_BF2:_BF2 + n, :]          # (N, 128)

    # ---- GraphConv 1: relu((A@x)@W_rel^T + x@W_root^T + b) — two K=16 dots + add ----
    agg1 = jnp.dot(adj, x, preferred_element_type=jnp.float32)
    h1 = jnp.maximum(
        jnp.dot(agg1, w1r, preferred_element_type=jnp.float32)
        + jnp.dot(x, w1o, preferred_element_type=jnp.float32)
        + b1, 0.0)

    # ---- GraphConv 2 ----
    agg2 = jnp.dot(adj, h1, preferred_element_type=jnp.float32)
    h2 = jnp.maximum(
        jnp.dot(agg2, w2r, preferred_element_type=jnp.float32)
        + jnp.dot(h1, w2o, preferred_element_type=jnp.float32)
        + b2, 0.0)

    # ---- fc1 + relu ----
    h3 = jnp.maximum(
        jnp.dot(h2, wf1, preferred_element_type=jnp.float32) + bf1, 0.0)

    # ---- fc2, emitted lane-dense into a (N, 128) slab (cols >= 2 are zero) ----
    out = jnp.dot(h3, wf2, preferred_element_type=jnp.float32) + bf2
    out_ref[...] = out.astype(out_ref.dtype)


def pack_params(params):
    """Pack all weights/biases into (104,16) + (16,128) f32 buffers (built once)."""
    ws = jnp.zeros((W_SMALL_ROWS, 16), jnp.float32)
    ws = ws.at[_W1R:_W1R + 16, :].set(params["w1_rel"].T)
    ws = ws.at[_W1O:_W1O + 16, :].set(params["w1_root"].T)
    ws = ws.at[_B1:_B1 + 8, :].set(jnp.broadcast_to(params["b1"], (8, 16)))
    ws = ws.at[_W2R:_W2R + 16, :].set(params["w2_rel"].T)
    ws = ws.at[_W2O:_W2O + 16, :].set(params["w2_root"].T)
    ws = ws.at[_B2:_B2 + 8, :].set(jnp.broadcast_to(params["b2"], (8, 16)))
    ws = ws.at[_WF1:_WF1 + 16, 0:8].set(params["wf1"].T)
    ws = ws.at[_BF1:_BF1 + 8, 0:8].set(jnp.broadcast_to(params["bf1"], (8, 8)))

    wf = jnp.zeros((W_FC2_ROWS, 128), jnp.float32)
    wf = wf.at[_WF2:_WF2 + 8, 0:2].set(params["wf2"].T)
    wf = wf.at[_BF2:_BF2 + 8, 0:2].set(jnp.broadcast_to(params["bf2"], (8, 2)))
    return ws, wf


@jax.jit
def gnn_forward_packed(x, edge_index, w_small, w_fc2):
    """x: (N, 16) f32, edge_index: (2, E) int32, packed weights from pack_params."""
    n = x.shape[0]
    assert n <= 8, "replicated-bias layout assumes N <= 8 (dense tiny-graph kernel)"
    vmem_spec = pl.BlockSpec(memory_space=pltpu.MemorySpace.VMEM)
    out_full = pl.pallas_call(
        gnn_kernel,
        out_shape=jax.ShapeDtypeStruct((n, 128), jnp.float32),
        in_specs=[vmem_spec, vmem_spec, vmem_spec, vmem_spec],
        out_specs=vmem_spec,
    )(x, edge_index.astype(jnp.int32), w_small, w_fc2)
    return out_full[:, :2]          # slice stays inside the jit


def gnn_forward(x, edge_index, params):
    w_small, w_fc2 = pack_params(params)
    return gnn_forward_packed(x, edge_index, w_small, w_fc2)


def ref_forward(x, edge_index, params):
    """Pure-JAX reference matching PyG GraphConv semantics."""
    n = x.shape[0]
    adj = jnp.zeros((n, n), jnp.float32).at[edge_index[1], edge_index[0]].add(1.0)
    h1 = jnp.maximum(
        (adj @ x) @ params["w1_rel"].T + params["b1"] + x @ params["w1_root"].T, 0.0)
    h2 = jnp.maximum(
        (adj @ h1) @ params["w2_rel"].T + params["b2"] + h1 @ params["w2_root"].T, 0.0)
    h3 = jnp.maximum(h2 @ params["wf1"].T + params["bf1"], 0.0)
    return h3 @ params["wf2"].T + params["bf2"]


def init_params(key):
    """Deterministic parameter init matching the module's shapes.
    conv1/conv2: GraphConv(16, 16) -> lin_rel (16,16)+bias(16), lin_root (16,16)
    fc1: Linear(16, 8); fc2: Linear(8, 2)."""
    ks = jax.random.split(key, 8)

    def u(k, shape, fan_in):
        bound = 1.0 / jnp.sqrt(fan_in)
        return jax.random.uniform(k, shape, jnp.float32, -bound, bound)

    return {
        "w1_rel":  u(ks[0], (16, 16), 16),
        "w1_root": u(ks[1], (16, 16), 16),
        "b1":      u(ks[2], (16,), 16),
        "w2_rel":  u(ks[3], (16, 16), 16),
        "w2_root": u(ks[4], (16, 16), 16),
        "b2":      u(ks[5], (16,), 16),
        "wf1":     u(ks[6], (8, 16), 16),
        "bf1":     jnp.zeros((8,), jnp.float32),
        "wf2":     u(ks[7], (2, 8), 8),
        "bf2":     jnp.zeros((2,), jnp.float32),
    }


if __name__ == "__main__":
    key = jax.random.PRNGKey(0)
    k_x, k_e, k_p = jax.random.split(key, 3)

    N, E = 8, 16                      # small graph: 8 nodes, 16 edges, 16-dim features
    x = jax.random.normal(k_x, (N, 16), jnp.float32)
    edge_index = jax.random.randint(k_e, (2, E), 0, N, jnp.int32)
    params = init_params(k_p)

    # Pack weights ONCE (static across forwards), then run the jitted forward.
    w_small, w_fc2 = pack_params(params)
    w_small, w_fc2 = jax.block_until_ready((w_small, w_fc2))

    out = gnn_forward_packed(x, edge_index, w_small, w_fc2)
    out = jax.block_until_ready(out)
    assert out.shape == (N, 2)

    ref = ref_forward(x, edge_index, params)
    assert jnp.allclose(out, ref, rtol=1e-5, atol=1e-5), "mismatch vs JAX reference"

    print("KERNEL_OK")
</pallas_src>

<mosaic_0001>
module attributes {stable_mosaic.version = 11 : i64} {
  func.func @gnn_kernel(%arg0: memref<8x16xf32, #tpu.memory_space<vmem>>, %arg1: memref<2x16xi32, #tpu.memory_space<vmem>>, %arg2: memref<104x16xf32, #tpu.memory_space<vmem>>, %arg3: memref<16x128xf32, #tpu.memory_space<vmem>>, %arg4: memref<8x128xf32, #tpu.memory_space<vmem>>) attributes {dimension_semantics = [], scalar_prefetch = 0 : i64, scratch_operands = 0 : i64, tpu.core_type = #tpu.core_type<tc>} {
    %c0 = arith.constant 0 : index
    %c0_0 = arith.constant 0 : index
    %0 = vector.load %arg0[%c0, %c0_0] : memref<8x16xf32, #tpu.memory_space<vmem>>, vector<8x16xf32>
    %c0_1 = arith.constant 0 : index
    %c0_2 = arith.constant 0 : index
    %1 = vector.load %arg1[%c0_1, %c0_2] : memref<2x16xi32, #tpu.memory_space<vmem>>, vector<2x16xi32>
    %2 = tpu.iota {dimensions = array<i32: 0>} : vector<8x16xi32>
    %3 = vector.extract_strided_slice %1 {offsets = [0, 0], sizes = [1, 16], strides = [1, 1]} : vector<2x16xi32> to vector<1x16xi32>
    %4 = vector.extract_strided_slice %1 {offsets = [1, 0], sizes = [1, 16], strides = [1, 1]} : vector<2x16xi32> to vector<1x16xi32>
    %5 = vector.broadcast %3 : vector<1x16xi32> to vector<8x16xi32>
    %6 = arith.cmpi eq, %2, %5 : vector<8x16xi32>
    %cst = arith.constant 1.000000e+00 : f32
    %cst_3 = arith.constant 0.000000e+00 : f32
    %7 = vector.broadcast %cst : f32 to vector<8x16xf32>
    %8 = vector.broadcast %cst_3 : f32 to vector<8x16xf32>
    %9 = arith.select %6, %7, %8 : vector<8x16xi1>, vector<8x16xf32>
    %10 = vector.broadcast %4 : vector<1x16xi32> to vector<8x16xi32>
    %11 = arith.cmpi eq, %2, %10 : vector<8x16xi32>
    %cst_4 = arith.constant 1.000000e+00 : f32
    %cst_5 = arith.constant 0.000000e+00 : f32
    %12 = vector.broadcast %cst_4 : f32 to vector<8x16xf32>
    %13 = vector.broadcast %cst_5 : f32 to vector<8x16xf32>
    %14 = arith.select %11, %12, %13 : vector<8x16xi1>, vector<8x16xf32>
    %cst_6 = arith.constant dense<0.000000e+00> : vector<8x8xf32>
    %15 = tpu.matmul %14, %9, %cst_6 {dimension_numbers = #tpu.dot_dimension_numbers<[1], [1], [0], [0], [0, 0, 1, 0], [], []>} : vector<8x16xf32>, vector<8x16xf32>, vector<8x8xf32> -> vector<8x8xf32>
    %c0_7 = arith.constant 0 : index
    %c0_8 = arith.constant 0 : index
    %16 = vector.load %arg2[%c0_7, %c0_8] : memref<104x16xf32, #tpu.memory_space<vmem>>, vector<16x16xf32>
    %c16 = arith.constant 16 : index
    %c0_9 = arith.constant 0 : index
    %17 = vector.load %arg2[%c16, %c0_9] : memref<104x16xf32, #tpu.memory_space<vmem>>, vector<16x16xf32>
    %c32 = arith.constant 32 : index
    %c0_10 = arith.constant 0 : index
    %18 = vector.load %arg2[%c32, %c0_10] : memref<104x16xf32, #tpu.memory_space<vmem>>, vector<8x16xf32>
    %c40 = arith.constant 40 : index
    %c0_11 = arith.constant 0 : index
    %19 = vector.load %arg2[%c40, %c0_11] : memref<104x16xf32, #tpu.memory_space<vmem>>, vector<16x16xf32>
    %c56 = arith.constant 56 : index
    %c0_12 = arith.constant 0 : index
    %20 = vector.load %arg2[%c56, %c0_12] : memref<104x16xf32, #tpu.memory_space<vmem>>, vector<16x16xf32>
    %c72 = arith.constant 72 : index
    %c0_13 = arith.constant 0 : index
    %21 = vector.load %arg2[%c72, %c0_13] : memref<104x16xf32, #tpu.memory_space<vmem>>, vector<8x16xf32>
    %c80 = arith.constant 80 : index
    %c0_14 = arith.constant 0 : index
    %22 = vector.load %arg2[%c80, %c0_14] : memref<104x16xf32, #tpu.memory_space<vmem>>, vector<16x8xf32>
    %c96 = arith.constant 96 : index
    %c0_15 = arith.constant 0 : index
    %23 = vector.load %arg2[%c96, %c0_15] : memref<104x16xf32, #tpu.memory_space<vmem>>, vector<8x8xf32>
    %c0_16 = arith.constant 0 : index
    %c0_17 = arith.constant 0 : index
    %24 = vector.load %arg3[%c0_16, %c0_17] : memref<16x128xf32, #tpu.memory_space<vmem>>, vector<8x128xf32>
    %c8 = arith.constant 8 : index
    %c0_18 = arith.constant 0 : index
    %25 = vector.load %arg3[%c8, %c0_18] : memref<16x128xf32, #tpu.memory_space<vmem>>, vector<8x128xf32>
    %cst_19 = arith.constant dense<0.000000e+00> : vector<8x16xf32>
    %26 = tpu.matmul %15, %0, %cst_19 {dimension_numbers = #tpu.dot_dimension_numbers<[1], [0], [0], [1], [0, 0, 1, 1], [], []>} : vector<8x8xf32>, vector<8x16xf32>, vector<8x16xf32> -> vector<8x16xf32>
    %cst_20 = arith.constant dense<0.000000e+00> : vector<8x16xf32>
    %27 = tpu.matmul %26, %16, %cst_20 {dimension_numbers = #tpu.dot_dimension_numbers<[1], [0], [0], [1], [0, 0, 1, 1], [], []>} : vector<8x16xf32>, vector<16x16xf32>, vector<8x16xf32> -> vector<8x16xf32>
    %cst_21 = arith.constant dense<0.000000e+00> : vector<8x16xf32>
    %28 = tpu.matmul %0, %17, %cst_21 {dimension_numbers = #tpu.dot_dimension_numbers<[1], [0], [0], [1], [0, 0, 1, 1], [], []>} : vector<8x16xf32>, vector<16x16xf32>, vector<8x16xf32> -> vector<8x16xf32>
    %29 = arith.addf %27, %28 : vector<8x16xf32>
    %30 = arith.addf %29, %18 : vector<8x16xf32>
    %cst_22 = arith.constant 0.000000e+00 : f32
    %31 = vector.broadcast %cst_22 : f32 to vector<8x16xf32>
    %32 = arith.maximumf %30, %31 : vector<8x16xf32>
    %cst_23 = arith.constant dense<0.000000e+00> : vector<8x16xf32>
    %33 = tpu.matmul %15, %32, %cst_23 {dimension_numbers = #tpu.dot_dimension_numbers<[1], [0], [0], [1], [0, 0, 1, 1], [], []>} : vector<8x8xf32>, vector<8x16xf32>, vector<8x16xf32> -> vector<8x16xf32>
    %cst_24 = arith.constant dense<0.000000e+00> : vector<8x16xf32>
    %34 = tpu.matmul %33, %19, %cst_24 {dimension_numbers = #tpu.dot_dimension_numbers<[1], [0], [0], [1], [0, 0, 1, 1], [], []>} : vector<8x16xf32>, vector<16x16xf32>, vector<8x16xf32> -> vector<8x16xf32>
    %cst_25 = arith.constant dense<0.000000e+00> : vector<8x16xf32>
    %35 = tpu.matmul %32, %20, %cst_25 {dimension_numbers = #tpu.dot_dimension_numbers<[1], [0], [0], [1], [0, 0, 1, 1], [], []>} : vector<8x16xf32>, vector<16x16xf32>, vector<8x16xf32> -> vector<8x16xf32>
    %36 = arith.addf %34, %35 : vector<8x16xf32>
    %37 = arith.addf %36, %21 : vector<8x16xf32>
    %cst_26 = arith.constant 0.000000e+00 : f32
    %38 = vector.broadcast %cst_26 : f32 to vector<8x16xf32>
    %39 = arith.maximumf %37, %38 : vector<8x16xf32>
    %cst_27 = arith.constant dense<0.000000e+00> : vector<8x8xf32>
    %40 = tpu.matmul %39, %22, %cst_27 {dimension_numbers = #tpu.dot_dimension_numbers<[1], [0], [0], [1], [0, 0, 1, 1], [], []>} : vector<8x16xf32>, vector<16x8xf32>, vector<8x8xf32> -> vector<8x8xf32>
    %41 = arith.addf %40, %23 : vector<8x8xf32>
    %cst_28 = arith.constant 0.000000e+00 : f32
    %42 = vector.broadcast %cst_28 : f32 to vector<8x8xf32>
    %43 = arith.maximumf %41, %42 : vector<8x8xf32>
    %cst_29 = arith.constant dense<0.000000e+00> : vector<8x128xf32>
    %44 = tpu.matmul %43, %24, %cst_29 {dimension_numbers = #tpu.dot_dimension_numbers<[1], [0], [0], [1], [0, 0, 1, 1], [], []>} : vector<8x8xf32>, vector<8x128xf32>, vector<8x128xf32> -> vector<8x128xf32>
    %45 = arith.addf %44, %25 : vector<8x128xf32>
    %c0_30 = arith.constant 0 : index
    %c0_31 = arith.constant 0 : index
    %46 = vector.load %arg4[%c0_30, %c0_31] : memref<8x128xf32, #tpu.memory_space<vmem>>, vector<8x128xf32>
    tpu.vector_store %arg4[%c0_30, %c0_31], %45 {strides = array<i32>} : memref<8x128xf32, #tpu.memory_space<vmem>>, vector<8x128xf32>,
    return
  }
}

</mosaic_0001>

<llo_original>
// kernel: gnn_forward_packed.1
$region0: #{gnn_forward_packed.1}
  #allocation0 [shape = 'u32[]', space=smem, size = 0x4, offset = 0x4, fixed_abs, tag = 'smem constant byte address 0x4 - core index']
  #allocation1 [shape = 'u32[144,128]{1,0:T(1,128)}', space=vmem, size = 0x12000, scoped, tag = 'internal scratch']
  %s0 = inlined_call_operand.vmem [shape: f32[8,16], index: 0, kind: input, shape index: {}]
  %s1 = inlined_call_operand.vmem [shape: s32[2,16], index: 1, kind: input, shape index: {}]
  %s2 = inlined_call_operand.vmem [shape: f32[104,16], index: 2, kind: input, shape index: {}]
  %s3 = inlined_call_operand.vmem [shape: f32[16,128], index: 3, kind: input, shape index: {}]
  %s4 = inlined_call_operand.vmem [shape: f32[8,128], index: 4, kind: output, shape index: {}]
  %s5 = sld [smem:[#allocation0]]
  $region26: #{gnn_forward_packed.1} parent=0
    _
  %s7 = ssub.s32 1, %s5
  %s8 = scalar_select 0, %s7, %s5
  // Predicated region
  $region2: #{gnn_forward_packed.1} parent=0 // pred_check
    _
  $region3: #{gnn_forward_packed.1} parent=0 // pred_check_branch
    %10 = sbr.rel (0) target = $region5
  $region4: #{gnn_forward_packed.1} parent=0 // pred_region
    _
  $region5: #{gnn_forward_packed.1} parent=0 // pred_fallthru
    _
  // Predicated region
  $region6: #{gnn_forward_packed.1} parent=0 // pred_check
    _
  $region7: #{gnn_forward_packed.1} parent=0 // pred_check_branch
    %12 = sbr.rel (0) target = $region9
  $region8: #{gnn_forward_packed.1} parent=0 // pred_region
    _
  $region9: #{gnn_forward_packed.1} parent=0 // pred_fallthru
    _
  // Predicated region
  $region10: #{gnn_forward_packed.1} parent=0 // pred_check
    _
  $region11: #{gnn_forward_packed.1} parent=0 // pred_check_branch
    %14 = sbr.rel (0) target = $region13
  $region12: #{gnn_forward_packed.1} parent=0 // pred_region
    _
  $region13: #{gnn_forward_packed.1} parent=0 // pred_fallthru
    _
  // Predicated region
  $region14: #{gnn_forward_packed.1} parent=0 // pred_check
    _
  $region15: #{gnn_forward_packed.1} parent=0 // pred_check_branch
    %16 = sbr.rel (0) target = $region17
  $region16: #{gnn_forward_packed.1} parent=0 // pred_region
    _
  $region17: #{gnn_forward_packed.1} parent=0 // pred_fallthru
    _
  %v17 = vld [vmem:[%s0] sm:$0xff]
  %v18 = vld [vmem:[%s1] sm:$0x3]
  %v19 = vlaneseq
  %v20 = vshrl.u32 %v19, 7
  %v21 = vlaneseq
  %v22 = vshrl.u32 %v21, 7
  %v23 = vsub.s32 0, %v22
  %v24 = vrot.slane %v18, %v23
  %vm25 = vcmp.eq.s32.totalorder %v20, %v24
  %v26 = vsel %vm25, 1.0, 0.0
  %v27 = vlaneseq
  %v28 = vshrl.u32 %v27, 7
  %v29 = vsub.s32 1, %v28
  %v30 = vrot.slane %v18, %v29
  %vm31 = vcmp.eq.s32.totalorder %v20, %v30
  %v32 = vsel %vm31, 1.0, 0.0
  %vm33 = vcmask 130048
  %v35 = vsel %vm33, %v32, 0
  %v38 = vsel %vm33, %v26, 0
  %40 = vmatprep.subr.mxu0 0.0
  %41 = vmatpush1.xpose.msra.mxu0 0.0
  %42 = vmatprep.subr.mxu0 0.0
  %43 = vmatpush1.xpose.msra.mxu0 0.0
  %44 = vmatprep.subr.mxu0 0.0
  %45 = vmatpush1.xpose.msra.mxu0 0.0
  %46 = vmatprep.subr.mxu0 0.0
  %47 = vmatpush1.xpose.msra.mxu0 0.0
  %48 = vmatprep.subr.mxu0 0.0
  %49 = vmatpush1.xpose.msra.mxu0 0.0
  %50 = vmatprep.subr.mxu0 0.0
  %51 = vmatpush1.xpose.msra.mxu0 0.0
  %52 = vmatprep.subr.mxu0 0.0
  %53 = vmatpush1.xpose.msra.mxu0 0.0
  %54 = vmatprep.subr.mxu0 0.0
  %55 = vmatpush1.xpose.msra.mxu0 0.0
  %56 = vmatprep.subr.mxu0 0.0
  %57 = vmatpush1.xpose.msra.mxu0 0.0
  %58 = vmatprep.subr.mxu0 0.0
  %59 = vmatpush1.xpose.msra.mxu0 0.0
  %60 = vmatprep.subr.mxu0 0.0
  %61 = vmatpush1.xpose.msra.mxu0 0.0
  %62 = vmatprep.subr.mxu0 0.0
  %63 = vmatpush1.xpose.msra.mxu0 0.0
  %64 = vmatprep.subr.mxu0 0.0
  %65 = vmatpush1.xpose.msra.mxu0 0.0
  %66 = vmatprep.subr.mxu0 0.0
  %67 = vmatpush1.xpose.msra.mxu0 0.0
  %68 = vmatprep.subr.mxu0 0.0
  %69 = vmatpush1.xpose.msra.mxu0 0.0
  %70 = vmatprep.subr.mxu0 0.0
  %71 = vmatpush1.xpose.msra.mxu0 %v38
  %72 = vmatprep.subr.mxu0 0.0
  %73 = vmatpush2.xpose.msra.mxu0 0.0
  %74 = vmatprep.subr.mxu0 0.0
  %75 = vmatpush2.xpose.msra.mxu0 0.0
  %76 = vmatprep.subr.mxu0 0.0
  %77 = vmatpush2.xpose.msra.mxu0 0.0
  %78 = vmatprep.subr.mxu0 0.0
  %79 = vmatpush2.xpose.msra.mxu0 0.0
  %80 = vmatprep.subr.mxu0 0.0
  %81 = vmatpush2.xpose.msra.mxu0 0.0
  %82 = vmatprep.subr.mxu0 0.0
  %83 = vmatpush2.xpose.msra.mxu0 0.0
  %84 = vmatprep.subr.mxu0 0.0
  %85 = vmatpush2.xpose.msra.mxu0 0.0
  %86 = vmatprep.subr.mxu0 0.0
  %87 = vmatpush2.xpose.msra.mxu0 0.0
  %88 = vmatprep.subr.mxu0 0.0
  %89 = vmatpush2.xpose.msra.mxu0 0.0
  %90 = vmatprep.subr.mxu0 0.0
  %91 = vmatpush2.xpose.msra.mxu0 0.0
  %92 = vmatprep.subr.mxu0 0.0
  %93 = vmatpush2.xpose.msra.mxu0 0.0
  %94 = vmatprep.subr.mxu0 0.0
  %95 = vmatpush2.xpose.msra.mxu0 0.0
  %96 = vmatprep.subr.mxu0 0.0
  %97 = vmatpush2.xpose.msra.mxu0 0.0
  %98 = vmatprep.subr.mxu0 0.0
  %99 = vmatpush2.xpose.msra.mxu0 0.0
  %100 = vmatprep.subr.mxu0 0.0
  %101 = vmatpush2.xpose.msra.mxu0 0.0
  %102 = vmatprep.subr.mxu0 0.0
  %103 = vmatpush2.xpose.msra.mxu0 0.0
  %104 = vmatprep.mubr.f32.mxu0 0.0
  %105 = vmatmul.mubr.f32.gmra.mxu0 %v35
  %v106 = vpop.f32.mrf.mxu0
  %v107 = vadd.f32 0.0, %v106
  %v108 = vpop.f32.mrf.mxu0
  %109 = vdwg.mxu0
  %v110 = vld [vmem:[%s2] sm:$0xff]
  %v111 = vld [vmem:[%s2 + $0x8] sm:$0xff]
  %v112 = vld [vmem:[%s2 + $0x10] sm:$0xff]
  %v113 = vld [vmem:[%s2 + $0x18] sm:$0xff]
  %v114 = vld [vmem:[%s2 + $0x20] sm:$0xff]
  %v115 = vld [vmem:[%s2 + $0x28] sm:$0xff]
  %v116 = vld [vmem:[%s2 + $0x30] sm:$0xff]
  %v117 = vld [vmem:[%s2 + $0x38] sm:$0xff]
  %v118 = vld [vmem:[%s2 + $0x40] sm:$0xff]
  %v119 = vld [vmem:[%s2 + $0x48] sm:$0xff]
  %v120 = vld [vmem:[%s2 + $0x50] sm:$0xff]
  %v121 = vld [vmem:[%s2 + $0x58] sm:$0xff]
  %v122 = vld [vmem:[%s2 + $0x60] sm:$0xff]
  %v123 = vld [vmem:[%s3] sm:$0xff]
  %v124 = vld [vmem:[%s3 + $0x8] sm:$0xff]
  %vm125 = vcmask 64512
  %v127 = vsel %vm125, %v107, 0
  %129 = vmatprep.subr.mxu0 0.0
  %130 = vmatpush1.msra.mxu0 0.0
  %131 = vmatprep.subr.mxu0 0.0
  %132 = vmatpush1.msra.mxu0 0.0
  %133 = vmatprep.subr.mxu0 0.0
  %134 = vmatpush1.msra.mxu0 0.0
  %135 = vmatprep.subr.mxu0 0.0
  %136 = vmatpush1.msra.mxu0 0.0
  %137 = vmatprep.subr.mxu0 0.0
  %138 = vmatpush1.msra.mxu0 0.0
  %139 = vmatprep.subr.mxu0 0.0
  %140 = vmatpush1.msra.mxu0 0.0
  %141 = vmatprep.subr.mxu0 0.0
  %142 = vmatpush1.msra.mxu0 0.0
  %143 = vmatprep.subr.mxu0 0.0
  %144 = vmatpush1.msra.mxu0 0.0
  %145 = vmatprep.subr.mxu0 0.0
  %146 = vmatpush1.msra.mxu0 0.0
  %147 = vmatprep.subr.mxu0 0.0
  %148 = vmatpush1.msra.mxu0 0.0
  %149 = vmatprep.subr.mxu0 0.0
  %150 = vmatpush1.msra.mxu0 0.0
  %151 = vmatprep.subr.mxu0 0.0
  %152 = vmatpush1.msra.mxu0 0.0
  %153 = vmatprep.subr.mxu0 0.0
  %154 = vmatpush1.msra.mxu0 0.0
  %155 = vmatprep.subr.mxu0 0.0
  %156 = vmatpush1.msra.mxu0 0.0
  %157 = vmatprep.subr.mxu0 0.0
  %158 = vmatpush1.msra.mxu0 0.0
  %159 = vmatprep.subr.mxu0 0.0
  %160 = vmatpush1.msra.mxu0 %v17
  %161 = vmatprep.subr.mxu0 0.0
  %162 = vmatpush2.msra.mxu0 0.0
  %163 = vmatprep.subr.mxu0 0.0
  %164 = vmatpush2.msra.mxu0 0.0
  %165 = vmatprep.subr.mxu0 0.0
  %166 = vmatpush2.msra.mxu0 0.0
  %167 = vmatprep.subr.mxu0 0.0
  %168 = vmatpush2.msra.mxu0 0.0
  %169 = vmatprep.subr.mxu0 0.0
  %170 = vmatpush2.msra.mxu0 0.0
  %171 = vmatprep.subr.mxu0 0.0
  %172 = vmatpush2.msra.mxu0 0.0
  %173 = vmatprep.subr.mxu0 0.0
  %174 = vmatpush2.msra.mxu0 0.0
  %175 = vmatprep.subr.mxu0 0.0
  %176 = vmatpush2.msra.mxu0 0.0
  %177 = vmatprep.subr.mxu0 0.0
  %178 = vmatpush2.msra.mxu0 0.0
  %179 = vmatprep.subr.mxu0 0.0
  %180 = vmatpush2.msra.mxu0 0.0
  %181 = vmatprep.subr.mxu0 0.0
  %182 = vmatpush2.msra.mxu0 0.0
  %183 = vmatprep.subr.mxu0 0.0
  %184 = vmatpush2.msra.mxu0 0.0
  %185 = vmatprep.subr.mxu0 0.0
  %186 = vmatpush2.msra.mxu0 0.0
  %187 = vmatprep.subr.mxu0 0.0
  %188 = vmatpush2.msra.mxu0 0.0
  %189 = vmatprep.subr.mxu0 0.0
  %190 = vmatpush2.msra.mxu0 0.0
  %191 = vmatprep.subr.mxu0 0.0
  %192 = vmatpush2.msra.mxu0 0.0
  %193 = vmatprep.mubr.f32.mxu0 0.0
  %194 = vmatmul.mubr.f32.gmra.mxu0 %v127
  %v195 = vpop.f32.mrf.mxu0
  %v196 = vadd.f32 0.0, %v195
  %v197 = vpop.f32.mrf.mxu0
  %198 = vdwg.mxu0
  %v200 = vsel %vm33, %v17, 0
  %202 = vmatprep.subr.mxu0 0.0
  %203 = vmatpush1.msra.mxu0 0.0
  %204 = vmatprep.subr.mxu0 0.0
  %205 = vmatpush1.msra.mxu0 0.0
  %206 = vmatprep.subr.mxu0 0.0
  %207 = vmatpush1.msra.mxu0 0.0
  %208 = vmatprep.subr.mxu0 0.0
  %209 = vmatpush1.msra.mxu0 0.0
  %210 = vmatprep.subr.mxu0 0.0
  %211 = vmatpush1.msra.mxu0 0.0
  %212 = vmatprep.subr.mxu0 0.0
  %213 = vmatpush1.msra.mxu0 0.0
  %214 = vmatprep.subr.mxu0 0.0
  %215 = vmatpush1.msra.mxu0 0.0
  %216 = vmatprep.subr.mxu0 0.0
  %217 = vmatpush1.msra.mxu0 0.0
  %218 = vmatprep.subr.mxu0 0.0
  %219 = vmatpush1.msra.mxu0 0.0
  %220 = vmatprep.subr.mxu0 0.0
  %221 = vmatpush1.msra.mxu0 0.0
  %222 = vmatprep.subr.mxu0 0.0
  %223 = vmatpush1.msra.mxu0 0.0
  %224 = vmatprep.subr.mxu0 0.0
  %225 = vmatpush1.msra.mxu0 0.0
  %226 = vmatprep.subr.mxu0 0.0
  %227 = vmatpush1.msra.mxu0 0.0
  %228 = vmatprep.subr.mxu0 0.0
  %229 = vmatpush1.msra.mxu0 0.0
  %230 = vmatprep.subr.mxu0 0.0
  %231 = vmatpush1.msra.mxu0 %v113
  %232 = vmatprep.subr.mxu0 0.0
  %233 = vmatpush1.msra.mxu0 %v112
  %234 = vmatprep.subr.mxu0 0.0
  %235 = vmatpush2.msra.mxu0 0.0
  %236 = vmatprep.subr.mxu0 0.0
  %237 = vmatpush2.msra.mxu0 0.0
  %238 = vmatprep.subr.mxu0 0.0
  %239 = vmatpush2.msra.mxu0 0.0
  %240 = vmatprep.subr.mxu0 0.0
  %241 = vmatpush2.msra.mxu0 0.0
  %242 = vmatprep.subr.mxu0 0.0
  %243 = vmatpush2.msra.mxu0 0.0
  %244 = vmatprep.subr.mxu0 0.0
  %245 = vmatpush2.msra.mxu0 0.0
  %246 = vmatprep.subr.mxu0 0.0
  %247 = vmatpush2.msra.mxu0 0.0
  %248 = vmatprep.subr.mxu0 0.0
  %249 = vmatpush2.msra.mxu0 0.0
  %250 = vmatprep.subr.mxu0 0.0
  %251 = vmatpush2.msra.mxu0 0.0
  %252 = vmatprep.subr.mxu0 0.0
  %253 = vmatpush2.msra.mxu0 0.0
  %254 = vmatprep.subr.mxu0 0.0
  %255 = vmatpush2.msra.mxu0 0.0
  %256 = vmatprep.subr.mxu0 0.0
  %257 = vmatpush2.msra.mxu0 0.0
  %258 = vmatprep.subr.mxu0 0.0
  %259 = vmatpush2.msra.mxu0 0.0
  %260 = vmatprep.subr.mxu0 0.0
  %261 = vmatpush2.msra.mxu0 0.0
  %262 = vmatprep.subr.mxu0 0.0
  %263 = vmatpush2.msra.mxu0 0.0
  %264 = vmatprep.subr.mxu0 0.0
  %265 = vmatpush2.msra.mxu0 0.0
  %266 = vmatprep.mubr.f32.mxu0 0.0
  %267 = vmatmul.mubr.f32.gmra.mxu0 %v200
  %v268 = vpop.f32.mrf.mxu0
  %v269 = vadd.f32 0.0, %v268
  %v270 = vpop.f32.mrf.mxu0
  %271 = vdwg.mxu0
  %v273 = vsel %vm33, %v196, 0
  %275 = vmatprep.subr.mxu0 0.0
  %276 = vmatpush1.msra.mxu0 0.0
  %277 = vmatprep.subr.mxu0 0.0
  %278 = vmatpush1.msra.mxu0 0.0
  %279 = vmatprep.subr.mxu0 0.0
  %280 = vmatpush1.msra.mxu0 0.0
  %281 = vmatprep.subr.mxu0 0.0
  %282 = vmatpush1.msra.mxu0 0.0
  %283 = vmatprep.subr.mxu0 0.0
  %284 = vmatpush1.msra.mxu0 0.0
  %285 = vmatprep.subr.mxu0 0.0
  %286 = vmatpush1.msra.mxu0 0.0
  %287 = vmatprep.subr.mxu0 0.0
  %288 = vmatpush1.msra.mxu0 0.0
  %289 = vmatprep.subr.mxu0 0.0
  %290 = vmatpush1.msra.mxu0 0.0
  %291 = vmatprep.subr.mxu0 0.0
  %292 = vmatpush1.msra.mxu0 0.0
  %293 = vmatprep.subr.mxu0 0.0
  %294 = vmatpush1.msra.mxu0 0.0
  %295 = vmatprep.subr.mxu0 0.0
  %296 = vmatpush1.msra.mxu0 0.0
  %297 = vmatprep.subr.mxu0 0.0
  %298 = vmatpush1.msra.mxu0 0.0
  %299 = vmatprep.subr.mxu0 0.0
  %300 = vmatpush1.msra.mxu0 0.0
  %301 = vmatprep.subr.mxu0 0.0
  %302 = vmatpush1.msra.mxu0 0.0
  %303 = vmatprep.subr.mxu0 0.0
  %304 = vmatpush1.msra.mxu0 %v111
  %305 = vmatprep.subr.mxu0 0.0
  %306 = vmatpush1.msra.mxu0 %v110
  %307 = vmatprep.subr.mxu0 0.0
  %308 = vmatpush2.msra.mxu0 0.0
  %309 = vmatprep.subr.mxu0 0.0
  %310 = vmatpush2.msra.mxu0 0.0
  %311 = vmatprep.subr.mxu0 0.0
  %312 = vmatpush2.msra.mxu0 0.0
  %313 = vmatprep.subr.mxu0 0.0
  %314 = vmatpush2.msra.mxu0 0.0
  %315 = vmatprep.subr.mxu0 0.0
  %316 = vmatpush2.msra.mxu0 0.0
  %317 = vmatprep.subr.mxu0 0.0
  %318 = vmatpush2.msra.mxu0 0.0
  %319 = vmatprep.subr.mxu0 0.0
  %320 = vmatpush2.msra.mxu0 0.0
  %321 = vmatprep.subr.mxu0 0.0
  %322 = vmatpush2.msra.mxu0 0.0
  %323 = vmatprep.subr.mxu0 0.0
  %324 = vmatpush2.msra.mxu0 0.0
  %325 = vmatprep.subr.mxu0 0.0
  %326 = vmatpush2.msra.mxu0 0.0
  %327 = vmatprep.subr.mxu0 0.0
  %328 = vmatpush2.msra.mxu0 0.0
  %329 = vmatprep.subr.mxu0 0.0
  %330 = vmatpush2.msra.mxu0 0.0
  %331 = vmatprep.subr.mxu0 0.0
  %332 = vmatpush2.msra.mxu0 0.0
  %333 = vmatprep.subr.mxu0 0.0
  %334 = vmatpush2.msra.mxu0 0.0
  %335 = vmatprep.subr.mxu0 0.0
  %336 = vmatpush2.msra.mxu0 0.0
  %337 = vmatprep.subr.mxu0 0.0
  %338 = vmatpush2.msra.mxu0 0.0
  %339 = vmatprep.mubr.f32.mxu0 0.0
  %340 = vmatmul.mubr.f32.gmra.mxu0 %v273
  %v341 = vpop.f32.mrf.mxu0
  %v342 = vadd.f32 %v269, %v341
  %v343 = vpop.f32.mrf.mxu0
  %344 = vdwg.mxu0
  %v345 = vadd.f32 %v342, %v114
  %v346 = vmax.f32 %v345, 0.0
  %347 = vmatprep.subr.mxu0 0.0
  %348 = vmatpush1.msra.mxu0 0.0
  %349 = vmatprep.subr.mxu0 0.0
  %350 = vmatpush1.msra.mxu0 0.0
  %351 = vmatprep.subr.mxu0 0.0
  %352 = vmatpush1.msra.mxu0 0.0
  %353 = vmatprep.subr.mxu0 0.0
  %354 = vmatpush1.msra.mxu0 0.0
  %355 = vmatprep.subr.mxu0 0.0
  %356 = vmatpush1.msra.mxu0 0.0
  %357 = vmatprep.subr.mxu0 0.0
  %358 = vmatpush1.msra.mxu0 0.0
  %359 = vmatprep.subr.mxu0 0.0
  %360 = vmatpush1.msra.mxu0 0.0
  %361 = vmatprep.subr.mxu0 0.0
  %362 = vmatpush1.msra.mxu0 0.0
  %363 = vmatprep.subr.mxu0 0.0
  %364 = vmatpush1.msra.mxu0 0.0
  %365 = vmatprep.subr.mxu0 0.0
  %366 = vmatpush1.msra.mxu0 0.0
  %367 = vmatprep.subr.mxu0 0.0
  %368 = vmatpush1.msra.mxu0 0.0
  %369 = vmatprep.subr.mxu0 0.0
  %370 = vmatpush1.msra.mxu0 0.0
  %371 = vmatprep.subr.mxu0 0.0
  %372 = vmatpush1.msra.mxu0 0.0
  %373 = vmatprep.subr.mxu0 0.0
  %374 = vmatpush1.msra.mxu0 0.0
  %375 = vmatprep.subr.mxu0 0.0
  %376 = vmatpush1.msra.mxu0 0.0
  %377 = vmatprep.subr.mxu0 0.0
  %378 = vmatpush1.msra.mxu0 %v346
  %379 = vmatprep.subr.mxu0 0.0
  %380 = vmatpush2.msra.mxu0 0.0
  %381 = vmatprep.subr.mxu0 0.0
  %382 = vmatpush2.msra.mxu0 0.0
  %383 = vmatprep.subr.mxu0 0.0
  %384 = vmatpush2.msra.mxu0 0.0
  %385 = vmatprep.subr.mxu0 0.0
  %386 = vmatpush2.msra.mxu0 0.0
  %387 = vmatprep.subr.mxu0 0.0
  %388 = vmatpush2.msra.mxu0 0.0
  %389 = vmatprep.subr.mxu0 0.0
  %390 = vmatpush2.msra.mxu0 0.0
  %391 = vmatprep.subr.mxu0 0.0
  %392 = vmatpush2.msra.mxu0 0.0
  %393 = vmatprep.subr.mxu0 0.0
  %394 = vmatpush2.msra.mxu0 0.0
  %395 = vmatprep.subr.mxu0 0.0
  %396 = vmatpush2.msra.mxu0 0.0
  %397 = vmatprep.subr.mxu0 0.0
  %398 = vmatpush2.msra.mxu0 0.0
  %399 = vmatprep.subr.mxu0 0.0
  %400 = vmatpush2.msra.mxu0 0.0
  %401 = vmatprep.subr.mxu0 0.0
  %402 = vmatpush2.msra.mxu0 0.0
  %403 = vmatprep.subr.mxu0 0.0
  %404 = vmatpush2.msra.mxu0 0.0
  %405 = vmatprep.subr.mxu0 0.0
  %406 = vmatpush2.msra.mxu0 0.0
  %407 = vmatprep.subr.mxu0 0.0
  %408 = vmatpush2.msra.mxu0 0.0
  %409 = vmatprep.subr.mxu0 0.0
  %410 = vmatpush2.msra.mxu0 0.0
  %411 = vmatprep.mubr.f32.mxu0 0.0
  %412 = vmatmul.mubr.f32.gmra.mxu0 %v127
  %v413 = vpop.f32.mrf.mxu0
  %v414 = vadd.f32 0.0, %v413
  %v415 = vpop.f32.mrf.mxu0
  %416 = vdwg.mxu0
  %v418 = vsel %vm33, %v346, 0
  %420 = vmatprep.subr.mxu0 0.0
  %421 = vmatpush1.msra.mxu0 0.0
  %422 = vmatprep.subr.mxu0 0.0
  %423 = vmatpush1.msra.mxu0 0.0
  %424 = vmatprep.subr.mxu0 0.0
  %425 = vmatpush1.msra.mxu0 0.0
  %426 = vmatprep.subr.mxu0 0.0
  %427 = vmatpush1.msra.mxu0 0.0
  %428 = vmatprep.subr.mxu0 0.0
  %429 = vmatpush1.msra.mxu0 0.0
  %430 = vmatprep.subr.mxu0 0.0
  %431 = vmatpush1.msra.mxu0 0.0
  %432 = vmatprep.subr.mxu0 0.0
  %433 = vmatpush1.msra.mxu0 0.0
  %434 = vmatprep.subr.mxu0 0.0
  %435 = vmatpush1.msra.mxu0 0.0
  %436 = vmatprep.subr.mxu0 0.0
  %437 = vmatpush1.msra.mxu0 0.0
  %438 = vmatprep.subr.mxu0 0.0
  %439 = vmatpush1.msra.mxu0 0.0
  %440 = vmatprep.subr.mxu0 0.0
  %441 = vmatpush1.msra.mxu0 0.0
  %442 = vmatprep.subr.mxu0 0.0
  %443 = vmatpush1.msra.mxu0 0.0
  %444 = vmatprep.subr.mxu0 0.0
  %445 = vmatpush1.msra.mxu0 0.0
  %446 = vmatprep.subr.mxu0 0.0
  %447 = vmatpush1.msra.mxu0 0.0
  %448 = vmatprep.subr.mxu0 0.0
  %449 = vmatpush1.msra.mxu0 %v118
  %450 = vmatprep.subr.mxu0 0.0
  %451 = vmatpush1.msra.mxu0 %v117
  %452 = vmatprep.subr.mxu0 0.0
  %453 = vmatpush2.msra.mxu0 0.0
  %454 = vmatprep.subr.mxu0 0.0
  %455 = vmatpush2.msra.mxu0 0.0
  %456 = vmatprep.subr.mxu0 0.0
  %457 = vmatpush2.msra.mxu0 0.0
  %458 = vmatprep.subr.mxu0 0.0
  %459 = vmatpush2.msra.mxu0 0.0
  %460 = vmatprep.subr.mxu0 0.0
  %461 = vmatpush2.msra.mxu0 0.0
  %462 = vmatprep.subr.mxu0 0.0
  %463 = vmatpush2.msra.mxu0 0.0
  %464 = vmatprep.subr.mxu0 0.0
  %465 = vmatpush2.msra.mxu0 0.0
  %466 = vmatprep.subr.mxu0 0.0
  %467 = vmatpush2.msra.mxu0 0.0
  %468 = vmatprep.subr.mxu0 0.0
  %469 = vmatpush2.msra.mxu0 0.0
  %470 = vmatprep.subr.mxu0 0.0
  %471 = vmatpush2.msra.mxu0 0.0
  %472 = vmatprep.subr.mxu0 0.0
  %473 = vmatpush2.msra.mxu0 0.0
  %474 = vmatprep.subr.mxu0 0.0
  %475 = vmatpush2.msra.mxu0 0.0
  %476 = vmatprep.subr.mxu0 0.0
  %477 = vmatpush2.msra.mxu0 0.0
  %478 = vmatprep.subr.mxu0 0.0
  %479 = vmatpush2.msra.mxu0 0.0
  %480 = vmatprep.subr.mxu0 0.0
  %481 = vmatpush2.msra.mxu0 0.0
  %482 = vmatprep.subr.mxu0 0.0
  %483 = vmatpush2.msra.mxu0 0.0
  %484 = vmatprep.mubr.f32.mxu0 0.0
  %485 = vmatmul.mubr.f32.gmra.mxu0 %v418
  %v486 = vpop.f32.mrf.mxu0
  %v487 = vadd.f32 0.0, %v486
  %v488 = vpop.f32.mrf.mxu0
  %489 = vdwg.mxu0
  %v491 = vsel %vm33, %v414, 0
  %493 = vmatprep.subr.mxu0 0.0
  %494 = vmatpush1.msra.mxu0 0.0
  %495 = vmatprep.subr.mxu0 0.0
  %496 = vmatpush1.msra.mxu0 0.0
  %497 = vmatprep.subr.mxu0 0.0
  %498 = vmatpush1.msra.mxu0 0.0
  %499 = vmatprep.subr.mxu0 0.0
  %500 = vmatpush1.msra.mxu0 0.0
  %501 = vmatprep.subr.mxu0 0.0
  %502 = vmatpush1.msra.mxu0 0.0
  %503 = vmatprep.subr.mxu0 0.0
  %504 = vmatpush1.msra.mxu0 0.0
  %505 = vmatprep.subr.mxu0 0.0
  %506 = vmatpush1.msra.mxu0 0.0
  %507 = vmatprep.subr.mxu0 0.0
  %508 = vmatpush1.msra.mxu0 0.0
  %509 = vmatprep.subr.mxu0 0.0
  %510 = vmatpush1.msra.mxu0 0.0
  %511 = vmatprep.subr.mxu0 0.0
  %512 = vmatpush1.msra.mxu0 0.0
  %513 = vmatprep.subr.mxu0 0.0
  %514 = vmatpush1.msra.mxu0 0.0
  %515 = vmatprep.subr.mxu0 0.0
  %516 = vmatpush1.msra.mxu0 0.0
  %517 = vmatprep.subr.mxu0 0.0
  %518 = vmatpush1.msra.mxu0 0.0
  %519 = vmatprep.subr.mxu0 0.0
  %520 = vmatpush1.msra.mxu0 0.0
  %521 = vmatprep.subr.mxu0 0.0
  %522 = vmatpush1.msra.mxu0 %v116
  %523 = vmatprep.subr.mxu0 0.0
  %524 = vmatpush1.msra.mxu0 %v115
  %525 = vmatprep.subr.mxu0 0.0
  %526 = vmatpush2.msra.mxu0 0.0
  %527 = vmatprep.subr.mxu0 0.0
  %528 = vmatpush2.msra.mxu0 0.0
  %529 = vmatprep.subr.mxu0 0.0
  %530 = vmatpush2.msra.mxu0 0.0
  %531 = vmatprep.subr.mxu0 0.0
  %532 = vmatpush2.msra.mxu0 0.0
  %533 = vmatprep.subr.mxu0 0.0
  %534 = vmatpush2.msra.mxu0 0.0
  %535 = vmatprep.subr.mxu0 0.0
  %536 = vmatpush2.msra.mxu0 0.0
  %537 = vmatprep.subr.mxu0 0.0
  %538 = vmatpush2.msra.mxu0 0.0
  %539 = vmatprep.subr.mxu0 0.0
  %540 = vmatpush2.msra.mxu0 0.0
  %541 = vmatprep.subr.mxu0 0.0
  %542 = vmatpush2.msra.mxu0 0.0
  %543 = vmatprep.subr.mxu0 0.0
  %544 = vmatpush2.msra.mxu0 0.0
  %545 = vmatprep.subr.mxu0 0.0
  %546 = vmatpush2.msra.mxu0 0.0
  %547 = vmatprep.subr.mxu0 0.0
  %548 = vmatpush2.msra.mxu0 0.0
  %549 = vmatprep.subr.mxu0 0.0
  %550 = vmatpush2.msra.mxu0 0.0
  %551 = vmatprep.subr.mxu0 0.0
  %552 = vmatpush2.msra.mxu0 0.0
  %553 = vmatprep.subr.mxu0 0.0
  %554 = vmatpush2.msra.mxu0 0.0
  %555 = vmatprep.subr.mxu0 0.0
  %556 = vmatpush2.msra.mxu0 0.0
  %557 = vmatprep.mubr.f32.mxu0 0.0
  %558 = vmatmul.mubr.f32.gmra.mxu0 %v491
  %v559 = vpop.f32.mrf.mxu0
  %v560 = vadd.f32 %v487, %v559
  %v561 = vpop.f32.mrf.mxu0
  %562 = vdwg.mxu0
  %v563 = vadd.f32 %v560, %v119
  %v564 = vmax.f32 %v563, 0.0
  %v566 = vsel %vm33, %v564, 0
  %568 = vmatprep.subr.mxu0 0.0
  %569 = vmatpush1.msra.mxu0 0.0
  %570 = vmatprep.subr.mxu0 0.0
  %571 = vmatpush1.msra.mxu0 0.0
  %572 = vmatprep.subr.mxu0 0.0
  %573 = vmatpush1.msra.mxu0 0.0
  %574 = vmatprep.subr.mxu0 0.0
  %575 = vmatpush1.msra.mxu0 0.0
  %576 = vmatprep.subr.mxu0 0.0
  %577 = vmatpush1.msra.mxu0 0.0
  %578 = vmatprep.subr.mxu0 0.0
  %579 = vmatpush1.msra.mxu0 0.0
  %580 = vmatprep.subr.mxu0 0.0
  %581 = vmatpush1.msra.mxu0 0.0
  %582 = vmatprep.subr.mxu0 0.0
  %583 = vmatpush1.msra.mxu0 0.0
  %584 = vmatprep.subr.mxu0 0.0
  %585 = vmatpush1.msra.mxu0 0.0
  %586 = vmatprep.subr.mxu0 0.0
  %587 = vmatpush1.msra.mxu0 0.0
  %588 = vmatprep.subr.mxu0 0.0
  %589 = vmatpush1.msra.mxu0 0.0
  %590 = vmatprep.subr.mxu0 0.0
  %591 = vmatpush1.msra.mxu0 0.0
  %592 = vmatprep.subr.mxu0 0.0
  %593 = vmatpush1.msra.mxu0 0.0
  %594 = vmatprep.subr.mxu0 0.0
  %595 = vmatpush1.msra.mxu0 0.0
  %596 = vmatprep.subr.mxu0 0.0
  %597 = vmatpush1.msra.mxu0 %v121
  %598 = vmatprep.subr.mxu0 0.0
  %599 = vmatpush1.msra.mxu0 %v120
  %600 = vmatprep.subr.mxu0 0.0
  %601 = vmatpush2.msra.mxu0 0.0
  %602 = vmatprep.subr.mxu0 0.0
  %603 = vmatpush2.msra.mxu0 0.0
  %604 = vmatprep.subr.mxu0 0.0
  %605 = vmatpush2.msra.mxu0 0.0
  %606 = vmatprep.subr.mxu0 0.0
  %607 = vmatpush2.msra.mxu0 0.0
  %608 = vmatprep.subr.mxu0 0.0
  %609 = vmatpush2.msra.mxu0 0.0
  %610 = vmatprep.subr.mxu0 0.0
  %611 = vmatpush2.msra.mxu0 0.0
  %612 = vmatprep.subr.mxu0 0.0
  %613 = vmatpush2.msra.mxu0 0.0
  %614 = vmatprep.subr.mxu0 0.0
  %615 = vmatpush2.msra.mxu0 0.0
  %616 = vmatprep.subr.mxu0 0.0
  %617 = vmatpush2.msra.mxu0 0.0
  %618 = vmatprep.subr.mxu0 0.0
  %619 = vmatpush2.msra.mxu0 0.0
  %620 = vmatprep.subr.mxu0 0.0
  %621 = vmatpush2.msra.mxu0 0.0
  %622 = vmatprep.subr.mxu0 0.0
  %623 = vmatpush2.msra.mxu0 0.0
  %624 = vmatprep.subr.mxu0 0.0
  %625 = vmatpush2.msra.mxu0 0.0
  %626 = vmatprep.subr.mxu0 0.0
  %627 = vmatpush2.msra.mxu0 0.0
  %628 = vmatprep.subr.mxu0 0.0
  %629 = vmatpush2.msra.mxu0 0.0
  %630 = vmatprep.subr.mxu0 0.0
  %631 = vmatpush2.msra.mxu0 0.0
  %632 = vmatprep.mubr.f32.mxu0 0.0
  %633 = vmatmul.mubr.f32.gmra.mxu0 %v566
  %v634 = vpop.f32.mrf.mxu0
  %v635 = vadd.f32 %v122, %v634
  %v636 = vpop.f32.mrf.mxu0
  %637 = vdwg.mxu0
  %v638 = vmax.f32 %v635, 0.0
  %v640 = vsel %vm125, %v638, 0
  %642 = vmatprep.subr.mxu0 0.0
  %643 = vmatpush1.msra.mxu0 0.0
  %644 = vmatprep.subr.mxu0 0.0
  %645 = vmatpush1.msra.mxu0 0.0
  %646 = vmatprep.subr.mxu0 0.0
  %647 = vmatpush1.msra.mxu0 0.0
  %648 = vmatprep.subr.mxu0 0.0
  %649 = vmatpush1.msra.mxu0 0.0
  %650 = vmatprep.subr.mxu0 0.0
  %651 = vmatpush1.msra.mxu0 0.0
  %652 = vmatprep.subr.mxu0 0.0
  %653 = vmatpush1.msra.mxu0 0.0
  %654 = vmatprep.subr.mxu0 0.0
  %655 = vmatpush1.msra.mxu0 0.0
  %656 = vmatprep.subr.mxu0 0.0
  %657 = vmatpush1.msra.mxu0 0.0
  %658 = vmatprep.subr.mxu0 0.0
  %659 = vmatpush1.msra.mxu0 0.0
  %660 = vmatprep.subr.mxu0 0.0
  %661 = vmatpush1.msra.mxu0 0.0
  %662 = vmatprep.subr.mxu0 0.0
  %663 = vmatpush1.msra.mxu0 0.0
  %664 = vmatprep.subr.mxu0 0.0
  %665 = vmatpush1.msra.mxu0 0.0
  %666 = vmatprep.subr.mxu0 0.0
  %667 = vmatpush1.msra.mxu0 0.0
  %668 = vmatprep.subr.mxu0 0.0
  %669 = vmatpush1.msra.mxu0 0.0
  %670 = vmatprep.subr.mxu0 0.0
  %671 = vmatpush1.msra.mxu0 0.0
  %672 = vmatprep.subr.mxu0 0.0
  %673 = vmatpush1.msra.mxu0 %v123
  %674 = vmatprep.subr.mxu0 0.0
  %675 = vmatpush2.msra.mxu0 0.0
  %676 = vmatprep.subr.mxu0 0.0
  %677 = vmatpush2.msra.mxu0 0.0
  %678 = vmatprep.subr.mxu0 0.0
  %679 = vmatpush2.msra.mxu0 0.0
  %680 = vmatprep.subr.mxu0 0.0
  %681 = vmatpush2.msra.mxu0 0.0
  %682 = vmatprep.subr.mxu0 0.0
  %683 = vmatpush2.msra.mxu0 0.0
  %684 = vmatprep.subr.mxu0 0.0
  %685 = vmatpush2.msra.mxu0 0.0
  %686 = vmatprep.subr.mxu0 0.0
  %687 = vmatpush2.msra.mxu0 0.0
  %688 = vmatprep.subr.mxu0 0.0
  %689 = vmatpush2.msra.mxu0 0.0
  %690 = vmatprep.subr.mxu0 0.0
  %691 = vmatpush2.msra.mxu0 0.0
  %692 = vmatprep.subr.mxu0 0.0
  %693 = vmatpush2.msra.mxu0 0.0
  %694 = vmatprep.subr.mxu0 0.0
  %695 = vmatpush2.msra.mxu0 0.0
  %696 = vmatprep.subr.mxu0 0.0
  %697 = vmatpush2.msra.mxu0 0.0
  %698 = vmatprep.subr.mxu0 0.0
  %699 = vmatpush2.msra.mxu0 0.0
  %700 = vmatprep.subr.mxu0 0.0
  %701 = vmatpush2.msra.mxu0 0.0
  %702 = vmatprep.subr.mxu0 0.0
  %703 = vmatpush2.msra.mxu0 0.0
  %704 = vmatprep.subr.mxu0 0.0
  %705 = vmatpush2.msra.mxu0 0.0
  %706 = vmatprep.mubr.f32.mxu0 0.0
  %707 = vmatmul.mubr.f32.gmra.mxu0 %v640
  %v708 = vpop.f32.mrf.mxu0
  %v709 = vadd.f32 %v124, %v708
  %v710 = vpop.f32.mrf.mxu0
  %711 = vdwg.mxu0
  %712 = vst [vmem:[%s4] sm:$0xff] %v709
  // Predicated region
  $region18: #{gnn_forward_packed.1} parent=0 // pred_check
    _
  $region19: #{gnn_forward_packed.1} parent=0 // pred_check_branch
    %714 = sbr.rel (0) target = $region21
  $region20: #{gnn_forward_packed.1} parent=0 // pred_region
    _
  $region21: #{gnn_forward_packed.1} parent=0 // pred_fallthru
    _
  // Predicated region
  $region22: #{gnn_forward_packed.1} parent=0 // pred_check
    _
  $region23: #{gnn_forward_packed.1} parent=0 // pred_check_branch
    %716 = sbr.rel (0) target = $region25
  $region24: #{gnn_forward_packed.1} parent=0 // pred_region
    _
  $region25: #{gnn_forward_packed.1} parent=0 // pred_fallthru
    _

</llo_original>
